<compile_context>
chip_gen: v7x
topology: tpu7x:2x2x1
jax: 0.10.0
libtpu: 0.0.40
codegen_flags: <defaults>
</compile_context>

<pallas_src>
import functools

import jax
import jax.numpy as jnp
from jax.experimental import pallas as pl
from jax.experimental.pallas import tpu as pltpu


def _round_up(n, m):
    return ((n + m - 1) // m) * m


def mine_kernel(x_ref, w1_ref, b1_ref, w2_ref, b2_ref, w3_ref, b3_ref, o_ref):
    # fc1 + relu (MXU matmul, f32 accumulation; bias/ReLU in f32)
    h1 = jnp.dot(x_ref[...], w1_ref[...], preferred_element_type=jnp.float32)
    h1 = jnp.maximum(h1 + b1_ref[...], 0.0)

    # fc2 + relu (cast back to matmul dtype only matters on the bf16 path)
    h1 = h1.astype(w2_ref.dtype)
    h2 = jnp.dot(h1, w2_ref[...], preferred_element_type=jnp.float32)
    h2 = jnp.maximum(h2 + b2_ref[...], 0.0)

    # fc3: output width 1 -> VPU multiply + lane reduction (no padded MXU matmul).
    # w3_ref is the fc3 weight row (1, H); b3_ref is (1, 1).
    w3_row = w3_ref[...].astype(jnp.float32)
    out = jnp.sum(h2 * w3_row, axis=-1, keepdims=True) + b3_ref[...]
    o_ref[...] = out.astype(o_ref.dtype)


@functools.partial(jax.jit, static_argnames=("tile_b", "use_bf16"))
def mine_forward(x, w1, b1, w2, b2, w3, b3, *, tile_b=256, use_bf16=False):
    """x: (B, D_in) float32.  Returns (B, 1) float32.

    tile_b:   batch tile (rows per grid step).  Large tiles amortize per-step
              pipeline overhead and fill the MXU rows.
    use_bf16: cast x/W1/W2 to bfloat16 for the matmuls (v6e/v7x MXU path);
              accumulation, biases and ReLU stay f32.
    """
    B, D_in = x.shape
    H = w1.shape[1]

    # Effective tile: as large as requested, but no larger than the (8-aligned) batch.
    tb = max(8, min(tile_b, _round_up(B, 8)))
    Bp = _round_up(B, tb)
    num_tiles = Bp // tb

    # Ragged batch: pad rows (computed then discarded; rows are independent).
    if Bp != B:
        x = jnp.pad(x, ((0, Bp - B), (0, 0)))

    # Small params: biases as (1, H) rows, fc3 weight as a (1, H) row, fc3 bias as (1, 1).
    b1r = b1.reshape(1, -1)
    b2r = b2.reshape(1, -1)
    w3r = w3.reshape(1, -1)
    b3r = b3.reshape(1, 1)

    mm_dtype = jnp.bfloat16 if use_bf16 else x.dtype
    xc = x.astype(mm_dtype)
    w1c = w1.astype(mm_dtype)
    w2c = w2.astype(mm_dtype)

    out = pl.pallas_call(
        mine_kernel,
        out_shape=jax.ShapeDtypeStruct((Bp, 1), jnp.float32),
        grid_spec=pltpu.PrefetchScalarGridSpec(
            num_scalar_prefetch=0,
            grid=(num_tiles,),
            in_specs=[
                pl.BlockSpec((tb, D_in), lambda i: (i, 0)),   # x tile (streamed)
                pl.BlockSpec((D_in, H), lambda i: (0, 0)),    # W1 (VMEM-resident)
                pl.BlockSpec((1, H), lambda i: (0, 0)),       # b1
                pl.BlockSpec((H, H), lambda i: (0, 0)),       # W2 (VMEM-resident)
                pl.BlockSpec((1, H), lambda i: (0, 0)),       # b2
                pl.BlockSpec((1, H), lambda i: (0, 0)),       # w3 row
                pl.BlockSpec((1, 1), lambda i: (0, 0)),       # b3
            ],
            out_specs=pl.BlockSpec((tb, 1), lambda i: (i, 0)),
        ),
        compiler_params=pltpu.CompilerParams(
            dimension_semantics=("parallel",)),
    )(xc, w1c, b1r, w2c, b2r, w3r, b3r)

    return out[:B]


def init_params(key, input_size, hidden_size):
    """Deterministic init matching nn.init.normal_(std=0.02) / constant_(0)."""
    k1, k2, k3 = jax.random.split(key, 3)
    # torch Linear stores weight as (out, in); we transpose to (in, out).
    w1 = (0.02 * jax.random.normal(k1, (hidden_size, input_size), jnp.float32)).T
    b1 = jnp.zeros((hidden_size,), jnp.float32)
    w2 = (0.02 * jax.random.normal(k2, (hidden_size, hidden_size), jnp.float32)).T
    b2 = jnp.zeros((hidden_size,), jnp.float32)
    w3 = (0.02 * jax.random.normal(k3, (1, hidden_size), jnp.float32)).T
    b3 = jnp.zeros((1,), jnp.float32)
    return w1, b1, w2, b2, w3, b3


if __name__ == "__main__":
    # Small shapes consistent with Mine(input_size, hidden_size).
    # Ragged batch (300) with tile_b=256 exercises the pad path and gives a 2-step grid
    # (both TensorCores get work on v7x via the "parallel" batch axis).
    batch, input_size, hidden_size = 300, 64, 128

    key = jax.random.PRNGKey(0)
    kx, kp = jax.random.split(key)
    x = jax.random.normal(kx, (batch, input_size), jnp.float32)
    w1, b1, w2, b2, w3, b3 = init_params(kp, input_size, hidden_size)

    # Pure-JAX reference.
    h1 = jnp.maximum(x @ w1 + b1, 0.0)
    h2 = jnp.maximum(h1 @ w2 + b2, 0.0)
    ref = h2 @ w3 + b3

    # f32 path (exact semantics of the PyTorch module).
    out = mine_forward(x, w1, b1, w2, b2, w3, b3, tile_b=256)
    out = jax.block_until_ready(out)
    assert out.shape == (batch, 1)
    assert jnp.allclose(out, ref, atol=1e-4, rtol=1e-4)

    # bf16-matmul path (v6e/v7x MXU optimization): looser tolerance vs f32 reference.
    out_bf16 = mine_forward(x, w1, b1, w2, b2, w3, b3, tile_b=256, use_bf16=True)
    out_bf16 = jax.block_until_ready(out_bf16)
    assert out_bf16.shape == (batch, 1)
    assert jnp.allclose(out_bf16, ref, atol=3e-2, rtol=3e-2)

    print("KERNEL_OK")
</pallas_src>

<mosaic_0001>
module attributes {stable_mosaic.version = 11 : i64} {
  func.func @mine_kernel(%arg0: i32, %arg1: memref<256x64xf32, #tpu.memory_space<vmem>>, %arg2: memref<64x128xf32, #tpu.memory_space<vmem>>, %arg3: memref<1x128xf32, #tpu.memory_space<vmem>>, %arg4: memref<128x128xf32, #tpu.memory_space<vmem>>, %arg5: memref<1x128xf32, #tpu.memory_space<vmem>>, %arg6: memref<1x128xf32, #tpu.memory_space<vmem>>, %arg7: memref<1x1xf32, #tpu.memory_space<vmem>>, %arg8: memref<256x1xf32, #tpu.memory_space<vmem>>) attributes {dimension_semantics = [#tpu.dimension_semantics<parallel>], iteration_bounds = array<i64: 2>, scalar_prefetch = 0 : i64, scratch_operands = 0 : i64, tpu.core_type = #tpu.core_type<tc>, window_params = [{transform_indices = @transform_0, window_bounds = array<i64: 256, 64>}, {pipeline_mode = #tpu.pipeline_mode<synchronous>, transform_indices = @transform_1, window_bounds = array<i64: 64, 128>}, {pipeline_mode = #tpu.pipeline_mode<synchronous>, transform_indices = @transform_2, window_bounds = array<i64: 1, 128>}, {pipeline_mode = #tpu.pipeline_mode<synchronous>, transform_indices = @transform_3, window_bounds = array<i64: 128, 128>}, {pipeline_mode = #tpu.pipeline_mode<synchronous>, transform_indices = @transform_4, window_bounds = array<i64: 1, 128>}, {pipeline_mode = #tpu.pipeline_mode<synchronous>, transform_indices = @transform_5, window_bounds = array<i64: 1, 128>}, {pipeline_mode = #tpu.pipeline_mode<synchronous>, transform_indices = @transform_6, window_bounds = array<i64: 1, 1>}, {transform_indices = @transform_7, window_bounds = array<i64: 256, 1>}]} {
    %c0 = arith.constant 0 : index
    %c0_0 = arith.constant 0 : index
    %0 = vector.load %arg1[%c0, %c0_0] : memref<256x64xf32, #tpu.memory_space<vmem>>, vector<256x64xf32>
    %c0_1 = arith.constant 0 : index
    %c0_2 = arith.constant 0 : index
    %1 = vector.load %arg2[%c0_1, %c0_2] : memref<64x128xf32, #tpu.memory_space<vmem>>, vector<64x128xf32>
    %cst = arith.constant dense<0.000000e+00> : vector<256x128xf32>
    %2 = tpu.matmul %0, %1, %cst {dimension_numbers = #tpu.dot_dimension_numbers<[1], [0], [0], [1], [0, 0, 1, 1], [], []>} : vector<256x64xf32>, vector<64x128xf32>, vector<256x128xf32> -> vector<256x128xf32>
    %c0_3 = arith.constant 0 : index
    %c0_4 = arith.constant 0 : index
    %3 = vector.load %arg3[%c0_3, %c0_4] : memref<1x128xf32, #tpu.memory_space<vmem>>, vector<1x128xf32>
    %4 = vector.broadcast %3 : vector<1x128xf32> to vector<256x128xf32>
    %5 = arith.addf %2, %4 : vector<256x128xf32>
    %cst_5 = arith.constant 0.000000e+00 : f32
    %6 = vector.broadcast %cst_5 : f32 to vector<256x128xf32>
    %7 = arith.maximumf %5, %6 : vector<256x128xf32>
    %c0_6 = arith.constant 0 : index
    %c0_7 = arith.constant 0 : index
    %8 = vector.load %arg4[%c0_6, %c0_7] : memref<128x128xf32, #tpu.memory_space<vmem>>, vector<128x128xf32>
    %cst_8 = arith.constant dense<0.000000e+00> : vector<256x128xf32>
    %9 = tpu.matmul %7, %8, %cst_8 {dimension_numbers = #tpu.dot_dimension_numbers<[1], [0], [0], [1], [0, 0, 1, 1], [], []>} : vector<256x128xf32>, vector<128x128xf32>, vector<256x128xf32> -> vector<256x128xf32>
    %c0_9 = arith.constant 0 : index
    %c0_10 = arith.constant 0 : index
    %10 = vector.load %arg5[%c0_9, %c0_10] : memref<1x128xf32, #tpu.memory_space<vmem>>, vector<1x128xf32>
    %11 = vector.broadcast %10 : vector<1x128xf32> to vector<256x128xf32>
    %12 = arith.addf %9, %11 : vector<256x128xf32>
    %cst_11 = arith.constant 0.000000e+00 : f32
    %13 = vector.broadcast %cst_11 : f32 to vector<256x128xf32>
    %14 = arith.maximumf %12, %13 : vector<256x128xf32>
    %c0_12 = arith.constant 0 : index
    %c0_13 = arith.constant 0 : index
    %15 = vector.load %arg6[%c0_12, %c0_13] : memref<1x128xf32, #tpu.memory_space<vmem>>, vector<1x128xf32>
    %16 = vector.broadcast %15 : vector<1x128xf32> to vector<256x128xf32>
    %17 = arith.mulf %14, %16 : vector<256x128xf32>
    %cst_14 = arith.constant dense<0.000000e+00> : vector<256xf32>
    %18 = vector.multi_reduction <add>, %17, %cst_14 [1] : vector<256x128xf32> to vector<256xf32>
    %19 = vector.shape_cast %18 : vector<256xf32> to vector<256x1xf32>
    %c0_15 = arith.constant 0 : index
    %c0_16 = arith.constant 0 : index
    %20 = vector.load %arg7[%c0_15, %c0_16] : memref<1x1xf32, #tpu.memory_space<vmem>>, vector<1x1xf32>
    %21 = vector.broadcast %20 : vector<1x1xf32> to vector<256x1xf32>
    %22 = arith.addf %19, %21 : vector<256x1xf32>
    %c0_17 = arith.constant 0 : index
    %c0_18 = arith.constant 0 : index
    %23 = vector.load %arg8[%c0_17, %c0_18] : memref<256x1xf32, #tpu.memory_space<vmem>>, vector<256x1xf32>
    tpu.vector_store %arg8[%c0_17, %c0_18], %22 {strides = array<i32>} : memref<256x1xf32, #tpu.memory_space<vmem>>, vector<256x1xf32>,
    return
  }
  func.func @transform_0(%arg0: i32) -> (i32, i32) {
    %c0_i32 = arith.constant 0 : i32
    %c0_i32_0 = arith.constant 0 : i32
    return %arg0, %c0_i32 : i32, i32
  }
  func.func @transform_1(%arg0: i32) -> (i32, i32) {
    %c0_i32 = arith.constant 0 : i32
    %c0_i32_0 = arith.constant 0 : i32
    %c0_i32_1 = arith.constant 0 : i32
    return %c0_i32, %c0_i32_0 : i32, i32
  }
  func.func @transform_2(%arg0: i32) -> (i32, i32) {
    %c0_i32 = arith.constant 0 : i32
    %c0_i32_0 = arith.constant 0 : i32
    %c0_i32_1 = arith.constant 0 : i32
    return %c0_i32, %c0_i32_0 : i32, i32
  }
  func.func @transform_3(%arg0: i32) -> (i32, i32) {
    %c0_i32 = arith.constant 0 : i32
    %c0_i32_0 = arith.constant 0 : i32
    %c0_i32_1 = arith.constant 0 : i32
    return %c0_i32, %c0_i32_0 : i32, i32
  }
  func.func @transform_4(%arg0: i32) -> (i32, i32) {
    %c0_i32 = arith.constant 0 : i32
    %c0_i32_0 = arith.constant 0 : i32
    %c0_i32_1 = arith.constant 0 : i32
    return %c0_i32, %c0_i32_0 : i32, i32
  }
  func.func @transform_5(%arg0: i32) -> (i32, i32) {
    %c0_i32 = arith.constant 0 : i32
    %c0_i32_0 = arith.constant 0 : i32
    %c0_i32_1 = arith.constant 0 : i32
    return %c0_i32, %c0_i32_0 : i32, i32
  }
  func.func @transform_6(%arg0: i32) -> (i32, i32) {
    %c0_i32 = arith.constant 0 : i32
    %c0_i32_0 = arith.constant 0 : i32
    %c0_i32_1 = arith.constant 0 : i32
    return %c0_i32, %c0_i32_0 : i32, i32
  }
  func.func @transform_7(%arg0: i32) -> (i32, i32) {
    %c0_i32 = arith.constant 0 : i32
    %c0_i32_0 = arith.constant 0 : i32
    return %arg0, %c0_i32 : i32, i32
  }
}

</mosaic_0001>

<llo_original>
// kernel: mine_forward.1
$region0: #{mine_forward.1}
  #allocation0 [shape = 'u32[]', space=smem, size = 0x4, offset = 0x4, fixed_abs, tag = 'smem constant byte address 0x4 - core index']
  #allocation1 [shape = 'u32[144,128]{1,0:T(1,128)}', space=vmem, size = 0x12000, scoped, tag = 'internal scratch']
  #allocation2 [shape = 'f32[1,1]{1,0:T(1,128)S(1)}', space=vmem, size = 0x200, scoped, tag = 'scoped memory for mine_forward.1']
  %s0 = inlined_call_operand.vmem [shape: f32[512,64], index: 0, kind: input, shape index: {}]
  %s1 = inlined_call_operand.vmem [shape: f32[64,128], index: 1, kind: input, shape index: {}]
  %s2 = inlined_call_operand.vmem [shape: f32[1,128], index: 2, kind: input, shape index: {}]
  %s3 = inlined_call_operand.vmem [shape: f32[128,128], index: 3, kind: input, shape index: {}]
  %s4 = inlined_call_operand.vmem [shape: f32[1,128], index: 4, kind: input, shape index: {}]
  %s5 = inlined_call_operand.vmem [shape: f32[1,128], index: 5, kind: input, shape index: {}]
  %s6 = inlined_call_operand.<no memory space> [shape: f32[1,1], index: 6, kind: input, shape index: {}]
  %s7 = inlined_call_operand.vmem [shape: f32[512,1], index: 7, kind: output, shape index: {}]
  %s8 = sld [smem:[#allocation0]]
  $region61: #{mine_forward.1} parent=0
    _
  %s10 = ssub.s32 1, %s8
  %s11 = scalar_select 0, %s10, %s8
  %v12 = vstv %s6
  %13 = vst [vmem:[#allocation2] sm:$0x1] %v12
  loop: start=0, step=1, limit=4
  $region2: #{mine_forward.1} parent=0 // loop_pre_header
    _
  $region3: #{mine_forward.1} parent=0 // loop_header
    %s15 = sphi 0, %s19
    %p16 = scmp.ge.s32.totalorder %s15, 4
    %s25 = sphi 0, %s27
    %s28 = sphi 0, %s25
    %s29 = sphi 0, %s28
    %s45 = sphi 0, %s29
    %s49 = sphi 0, %s49
    %s51 = sphi 0, %s49
    %s52 = sphi 0, %s51
    %s66 = sphi 0, %s52
    %s70 = sphi 0, %s70
    %s72 = sphi 0, %s70
    %s73 = sphi 0, %s72
    %s87 = sphi 0, %s73
    %s91 = sphi 0, %s91
    %s93 = sphi 0, %s91
    %s94 = sphi 0, %s93
    %s108 = sphi 0, %s94
    %s112 = sphi 0, %s112
    %s114 = sphi 0, %s112
    %s115 = sphi 0, %s114
    %s129 = sphi 0, %s115
    %s133 = sphi 0, %s133
    %s135 = sphi 0, %s133
    %s136 = sphi 0, %s135
    %s150 = sphi 0, %s136
    %s154 = sphi 0, %s154
    %s156 = sphi 0, %s154
    %s157 = sphi 0, %s156
    %s171 = sphi 0, %s157
    %s177 = sphi 0, %s179
    %s180 = sphi 0, %s177
    %s181 = sphi 0, %s180
    %s197 = sphi 0, %s181
  $region4: #{mine_forward.1} parent=0 // loop_header_branch
    %18 = sbr.rel (%p16) target = $region8
  $region5: #{mine_forward.1} parent=0 // loop_body
    %s20 = ssub.s32 %s15, 1
    %s21 = ssub.s32 %s15, 2
    %s22 = sadd.s32 %s15, 1
    %s23 = ssub.s32 %s15, %s22
    %p24 = scmp.eq.s32.totalorder %s23, 0
    %s26 = sadd.s32 %s25, 1
    %s27 = scalar_select %p24, %s25, %s26
    %p30 = pneg %p24
    %p31 = scmp.eq.s32.totalorder %s15, 1
    %p32 = por %p30, %p31
    %p33 = scmp.ne.s32.totalorder %s25, %s28
    %p34 = scmp.eq.s32.totalorder %s15, 0
    %p35 = por %p33, %p34
    %p36 = scmp.ne.s32.totalorder %s25, %s28
    %p37 = scmp.eq.s32.totalorder %s20, 1
    %p38 = por %p36, %p37
    %p39 = scmp.ne.s32.totalorder %s28, %s29
    %p40 = scmp.eq.s32.totalorder %s20, 0
    %p41 = por %p39, %p40
    %p42 = scmp.ne.s32.totalorder %s28, %s29
    %p43 = scmp.eq.s32.totalorder %s21, 1
    %p44 = por %p42, %p43
    %p46 = scmp.ne.s32.totalorder %s29, %s45
    %p47 = scmp.eq.s32.totalorder %s21, 0
    %p48 = por %p46, %p47
    %s50 = sadd.s32 %s49, 1
    %p53 = scmp.eq.s32.totalorder %s15, 1
    %p54 = scmp.ne.s32.totalorder %s49, %s51
    %p55 = scmp.eq.s32.totalorder %s15, 0
    %p56 = por %p54, %p55
    %p57 = scmp.ne.s32.totalorder %s49, %s51
    %p58 = scmp.eq.s32.totalorder %s20, 1
    %p59 = por %p57, %p58
    %p60 = scmp.ne.s32.totalorder %s51, %s52
    %p61 = scmp.eq.s32.totalorder %s20, 0
    %p62 = por %p60, %p61
    %p63 = scmp.ne.s32.totalorder %s51, %s52
    %p64 = scmp.eq.s32.totalorder %s21, 1
    %p65 = por %p63, %p64
    %p67 = scmp.ne.s32.totalorder %s52, %s66
    %p68 = scmp.eq.s32.totalorder %s21, 0
    %p69 = por %p67, %p68
    %s71 = sadd.s32 %s70, 1
    %p74 = scmp.eq.s32.totalorder %s15, 1
    %p75 = scmp.ne.s32.totalorder %s70, %s72
    %p76 = scmp.eq.s32.totalorder %s15, 0
    %p77 = por %p75, %p76
    %p78 = scmp.ne.s32.totalorder %s70, %s72
    %p79 = scmp.eq.s32.totalorder %s20, 1
    %p80 = por %p78, %p79
    %p81 = scmp.ne.s32.totalorder %s72, %s73
    %p82 = scmp.eq.s32.totalorder %s20, 0
    %p83 = por %p81, %p82
    %p84 = scmp.ne.s32.totalorder %s72, %s73
    %p85 = scmp.eq.s32.totalorder %s21, 1
    %p86 = por %p84, %p85
    %p88 = scmp.ne.s32.totalorder %s73, %s87
    %p89 = scmp.eq.s32.totalorder %s21, 0
    %p90 = por %p88, %p89
    %s92 = sadd.s32 %s91, 1
    %p95 = scmp.eq.s32.totalorder %s15, 1
    %p96 = scmp.ne.s32.totalorder %s91, %s93
    %p97 = scmp.eq.s32.totalorder %s15, 0
    %p98 = por %p96, %p97
    %p99 = scmp.ne.s32.totalorder %s91, %s93
    %p100 = scmp.eq.s32.totalorder %s20, 1
    %p101 = por %p99, %p100
    %p102 = scmp.ne.s32.totalorder %s93, %s94
    %p103 = scmp.eq.s32.totalorder %s20, 0
    %p104 = por %p102, %p103
    %p105 = scmp.ne.s32.totalorder %s93, %s94
    %p106 = scmp.eq.s32.totalorder %s21, 1
    %p107 = por %p105, %p106
    %p109 = scmp.ne.s32.totalorder %s94, %s108
    %p110 = scmp.eq.s32.totalorder %s21, 0
    %p111 = por %p109, %p110
    %s113 = sadd.s32 %s112, 1
    %p116 = scmp.eq.s32.totalorder %s15, 1
    %p117 = scmp.ne.s32.totalorder %s112, %s114
    %p118 = scmp.eq.s32.totalorder %s15, 0
    %p119 = por %p117, %p118
    %p120 = scmp.ne.s32.totalorder %s112, %s114
    %p121 = scmp.eq.s32.totalorder %s20, 1
    %p122 = por %p120, %p121
    %p123 = scmp.ne.s32.totalorder %s114, %s115
    %p124 = scmp.eq.s32.totalorder %s20, 0
    %p125 = por %p123, %p124
    %p126 = scmp.ne.s32.totalorder %s114, %s115
    %p127 = scmp.eq.s32.totalorder %s21, 1
    %p128 = por %p126, %p127
    %p130 = scmp.ne.s32.totalorder %s115, %s129
    %p131 = scmp.eq.s32.totalorder %s21, 0
    %p132 = por %p130, %p131
    %s134 = sadd.s32 %s133, 1
    %p137 = scmp.eq.s32.totalorder %s15, 1
    %p138 = scmp.ne.s32.totalorder %s133, %s135
    %p139 = scmp.eq.s32.totalorder %s15, 0
    %p140 = por %p138, %p139
    %p141 = scmp.ne.s32.totalorder %s133, %s135
    %p142 = scmp.eq.s32.totalorder %s20, 1
    %p143 = por %p141, %p142
    %p144 = scmp.ne.s32.totalorder %s135, %s136
    %p145 = scmp.eq.s32.totalorder %s20, 0
    %p146 = por %p144, %p145
    %p147 = scmp.ne.s32.totalorder %s135, %s136
    %p148 = scmp.eq.s32.totalorder %s21, 1
    %p149 = por %p147, %p148
    %p151 = scmp.ne.s32.totalorder %s136, %s150
    %p152 = scmp.eq.s32.totalorder %s21, 0
    %p153 = por %p151, %p152
    %s155 = sadd.s32 %s154, 1
    %p158 = scmp.eq.s32.totalorder %s15, 1
    %p159 = scmp.ne.s32.totalorder %s154, %s156
    %p160 = scmp.eq.s32.totalorder %s15, 0
    %p161 = por %p159, %p160
    %p162 = scmp.ne.s32.totalorder %s154, %s156
    %p163 = scmp.eq.s32.totalorder %s20, 1
    %p164 = por %p162, %p163
    %p165 = scmp.ne.s32.totalorder %s156, %s157
    %p166 = scmp.eq.s32.totalorder %s20, 0
    %p167 = por %p165, %p166
    %p168 = scmp.ne.s32.totalorder %s156, %s157
    %p169 = scmp.eq.s32.totalorder %s21, 1
    %p170 = por %p168, %p169
    %p172 = scmp.ne.s32.totalorder %s157, %s171
    %p173 = scmp.eq.s32.totalorder %s21, 0
    %p174 = por %p172, %p173
    %s175 = ssub.s32 %s15, %s22
    %p176 = scmp.eq.s32.totalorder %s175, 0
    %s178 = sadd.s32 %s177, 1
    %s179 = scalar_select %p176, %s177, %s178
    %p182 = pneg %p176
    %p183 = scmp.eq.s32.totalorder %s15, 1
    %p184 = por %p182, %p183
    %p185 = scmp.ne.s32.totalorder %s177, %s180
    %p186 = scmp.eq.s32.totalorder %s15, 0
    %p187 = por %p185, %p186
    %p188 = scmp.ne.s32.totalorder %s177, %s180
    %p189 = scmp.eq.s32.totalorder %s20, 1
    %p190 = por %p188, %p189
    %p191 = scmp.ne.s32.totalorder %s180, %s181
    %p192 = scmp.eq.s32.totalorder %s20, 0
    %p193 = por %p191, %p192
    %p194 = scmp.ne.s32.totalorder %s180, %s181
    %p195 = scmp.eq.s32.totalorder %s21, 1
    %p196 = por %p194, %p195
    %p198 = scmp.ne.s32.totalorder %s181, %s197
    %p199 = scmp.eq.s32.totalorder %s21, 0
    %p200 = por %p198, %p199
    %p201 = scmp.le.s32.totalorder 1, %s15
    %p202 = scmp.lt.s32.totalorder %s15, 3
    %p203 = pnand %p201, %p202
    %p204 = pneg %p203
    // Predicated region
    $region9: #{mine_forward.1} parent=5 // pred_check
      _
    $region10: #{mine_forward.1} parent=5 // pred_check_branch
      %206 = sbr.rel (%p203) target = $region12
    $region11: #{mine_forward.1} parent=5 // pred_region
      %s207 = ssub.s32 %s15, 1
      // Predicated region
      $region13: #{mine_forward.1} parent=11 // pred_check
        %p208 = pneg %p62
      $region14: #{mine_forward.1} parent=11 // pred_check_branch
        %210 = sbr.rel (%p208) target = $region16
      $region15: #{mine_forward.1} parent=11 // pred_region
        _
      $region16: #{mine_forward.1} parent=11 // pred_fallthru
        _
      // Predicated region
      $region17: #{mine_forward.1} parent=11 // pred_check
        %p211 = pneg %p83
      $region18: #{mine_forward.1} parent=11 // pred_check_branch
        %213 = sbr.rel (%p211) target = $region20
      $region19: #{mine_forward.1} parent=11 // pred_region
        _
      $region20: #{mine_forward.1} parent=11 // pred_fallthru
        _
      // Predicated region
      $region21: #{mine_forward.1} parent=11 // pred_check
        %p214 = pneg %p104
      $region22: #{mine_forward.1} parent=11 // pred_check_branch
        %216 = sbr.rel (%p214) target = $region24
      $region23: #{mine_forward.1} parent=11 // pred_region
        _
      $region24: #{mine_forward.1} parent=11 // pred_fallthru
        _
      // Predicated region
      $region25: #{mine_forward.1} parent=11 // pred_check
        %p217 = pneg %p125
      $region26: #{mine_forward.1} parent=11 // pred_check_branch
        %219 = sbr.rel (%p217) target = $region28
      $region27: #{mine_forward.1} parent=11 // pred_region
        _
      $region28: #{mine_forward.1} parent=11 // pred_fallthru
        _
      // Predicated region
      $region29: #{mine_forward.1} parent=11 // pred_check
        %p220 = pneg %p146
      $region30: #{mine_forward.1} parent=11 // pred_check_branch
        %222 = sbr.rel (%p220) target = $region32
      $region31: #{mine_forward.1} parent=11 // pred_region
        _
      $region32: #{mine_forward.1} parent=11 // pred_fallthru
        _
      // Predicated region
      $region33: #{mine_forward.1} parent=11 // pred_check
        %p223 = pneg %p167
      $region34: #{mine_forward.1} parent=11 // pred_check_branch
        %225 = sbr.rel (%p223) target = $region36
      $region35: #{mine_forward.1} parent=11 // pred_region
        _
      $region36: #{mine_forward.1} parent=11 // pred_fallthru
        _
    $region12: #{mine_forward.1} parent=5 // pred_fallthru
      _
    %p226 = scmp.lt.s32.totalorder %s15, 2
    // Predicated region
    $region37: #{mine_forward.1} parent=5 // pred_check
      %p227 = pneg %p226
    $region38: #{mine_forward.1} parent=5 // pred_check_branch
      %229 = sbr.rel (%p227) target = $region40
    $region39: #{mine_forward.1} parent=5 // pred_region
      // Predicated region
      $region41: #{mine_forward.1} parent=39 // pred_check
        %p230 = pneg %p35
      $region42: #{mine_forward.1} parent=39 // pred_check_branch
        %232 = sbr.rel (%p230) target = $region44
      $region43: #{mine_forward.1} parent=39 // pred_region
        %s233 = smul.u32 32, %s15
        %p234 = scmp.lt.s32.totalorder %s233, 63
        %s235 = scalar_select %p234, %s233, 63
        %s236 = smul.addr %s235, 8
        %s237 = scalar_lea.vmem %s0, %s236
        %s238 = smul.u32 32, %s15
      $region44: #{mine_forward.1} parent=39 // pred_fallthru
        _
    $region40: #{mine_forward.1} parent=5 // pred_fallthru
      _
    %p239 = scmp.le.s32.totalorder 1, %s15
    %p240 = scmp.lt.s32.totalorder %s15, 3
    %p241 = pnand %p239, %p240
    %p242 = pneg %p241
    // Predicated region
    $region45: #{mine_forward.1} parent=5 // pred_check
      _
    $region46: #{mine_forward.1} parent=5 // pred_check_branch
      %244 = sbr.rel (%p241) target = $region48
    $region47: #{mine_forward.1} parent=5 // pred_region
      %s245 = ssub.s32 %s15, 1
      %s246 = smul.u32 32, %s20
      %p247 = scmp.lt.s32.totalorder %s246, 63
      %s248 = scalar_select %p247, %s246, 63
      %s249 = smul.addr %s248, 8
      %s250 = scalar_lea.vmem %s0, %s249
      %p251 = pneg %p41
      %p252 = pneg %p38
      %p253 = pneg %p62
      %p254 = pneg %p59
      %p255 = pneg %p83
      %p256 = pneg %p80
      %p257 = pneg %p104
      %p258 = pneg %p101
      %p259 = pneg %p125
      %p260 = pneg %p122
      %p261 = pneg %p146
      %p262 = pneg %p143
      %p263 = pneg %p167
      %p264 = pneg %p164
      %p265 = pneg %p193
      %p266 = pneg %p190
      %s267 = smul.u32 32, %s20
      %p268 = scmp.lt.s32.totalorder %s267, 63
      %s269 = scalar_select %p268, %s267, 63
      %s270 = smul.addr %s269, 8
      %s271 = scalar_lea.vmem %s7, %s270
      %s272 = smul.u32 32, %s20
      %p273 = scmp.lt.s32.totalorder %s272, 63
      %s274 = scalar_select %p273, %s272, 63
      %s275 = smul.addr %s274, 8
      %s276 = scalar_lea.vmem %s0, %s275
      %s277 = smul.u32 32, %s20
      %s278 = smul.u32 32, %s20
      %p279 = scmp.lt.s32.totalorder %s278, 63
      %s280 = scalar_select %p279, %s278, 63
      %s281 = smul.addr %s280, 8
      %s282 = scalar_lea.vmem %s7, %s281
      %s283 = smul.u32 32, %s20
      %v284 = vld [vmem:[%s276] sm:$0xff]
      %v285 = vld [vmem:[%s276 + $0x8] sm:$0xff]
      %v286 = vld [vmem:[%s276 + $0x10] sm:$0xff]
      %v287 = vld [vmem:[%s276 + $0x18] sm:$0xff]
      %v288 = vld [vmem:[%s276 + $0x20] sm:$0xff]
      %v289 = vld [vmem:[%s276 + $0x28] sm:$0xff]
      %v290 = vld [vmem:[%s276 + $0x30] sm:$0xff]
      %v291 = vld [vmem:[%s276 + $0x38] sm:$0xff]
      %v292 = vld [vmem:[%s276 + $0x40] sm:$0xff]
      %v293 = vld [vmem:[%s276 + $0x48] sm:$0xff]
      %v294 = vld [vmem:[%s276 + $0x50] sm:$0xff]
      %v295 = vld [vmem:[%s276 + $0x58] sm:$0xff]
      %v296 = vld [vmem:[%s276 + $0x60] sm:$0xff]
      %v297 = vld [vmem:[%s276 + $0x68] sm:$0xff]
      %v298 = vld [vmem:[%s276 + $0x70] sm:$0xff]
      %v299 = vld [vmem:[%s276 + $0x78] sm:$0xff]
      %v300 = vld [vmem:[%s276 + $0x80] sm:$0xff]
      %v301 = vld [vmem:[%s276 + $0x88] sm:$0xff]
      %v302 = vld [vmem:[%s276 + $0x90] sm:$0xff]
      %v303 = vld [vmem:[%s276 + $0x98] sm:$0xff]
      %v304 = vld [vmem:[%s276 + $0xa0] sm:$0xff]
      %v305 = vld [vmem:[%s276 + $0xa8] sm:$0xff]
      %v306 = vld [vmem:[%s276 + $0xb0] sm:$0xff]
      %v307 = vld [vmem:[%s276 + $0xb8] sm:$0xff]
      %v308 = vld [vmem:[%s276 + $0xc0] sm:$0xff]
      %v309 = vld [vmem:[%s276 + $0xc8] sm:$0xff]
      %v310 = vld [vmem:[%s276 + $0xd0] sm:$0xff]
      %v311 = vld [vmem:[%s276 + $0xd8] sm:$0xff]
      %v312 = vld [vmem:[%s276 + $0xe0] sm:$0xff]
      %v313 = vld [vmem:[%s276 + $0xe8] sm:$0xff]
      %v314 = vld [vmem:[%s276 + $0xf0] sm:$0xff]
      %v315 = vld [vmem:[%s276 + $0xf8] sm:$0xff]
      %v316 = vld [vmem:[%s1] sm:$0xff]
      %v317 = vld [vmem:[%s1 + $0x8] sm:$0xff]
      %v318 = vld [vmem:[%s1 + $0x10] sm:$0xff]
      %v319 = vld [vmem:[%s1 + $0x18] sm:$0xff]
      %v320 = vld [vmem:[%s1 + $0x20] sm:$0xff]
      %v321 = vld [vmem:[%s1 + $0x28] sm:$0xff]
      %v322 = vld [vmem:[%s1 + $0x30] sm:$0xff]
      %v323 = vld [vmem:[%s1 + $0x38] sm:$0xff]
      %v324 = vld [vmem:[%s2] sm:$0x1]
      %v326 = vlaneseq
      %v327 = vshrl.u32 %v326, 7
      %v328 = vsub.s32 0, %v327
      %v329 = vrot.slane %v324, %v328
      %vm331 = vcmask 523264
      %v333 = vsel %vm331, %v284, 0
      %v336 = vsel %vm331, %v285, 0
      %v339 = vsel %vm331, %v286, 0
      %v342 = vsel %vm331, %v287, 0
      %v345 = vsel %vm331, %v288, 0
      %v348 = vsel %vm331, %v289, 0
      %v351 = vsel %vm331, %v290, 0
      %v354 = vsel %vm331, %v291, 0
      %v357 = vsel %vm331, %v292, 0
      %v360 = vsel %vm331, %v293, 0
      %v363 = vsel %vm331, %v294, 0
      %v366 = vsel %vm331, %v295, 0
      %v369 = vsel %vm331, %v296, 0
      %v372 = vsel %vm331, %v297, 0
      %v375 = vsel %vm331, %v298, 0
      %v378 = vsel %vm331, %v299, 0
      %v381 = vsel %vm331, %v300, 0
      %v384 = vsel %vm331, %v301, 0
      %v387 = vsel %vm331, %v302, 0
      %v390 = vsel %vm331, %v303, 0
      %v393 = vsel %vm331, %v304, 0
      %v396 = vsel %vm331, %v305, 0
      %v399 = vsel %vm331, %v306, 0
      %v402 = vsel %vm331, %v307, 0
      %v405 = vsel %vm331, %v308, 0
      %v408 = vsel %vm331, %v309, 0
      %v411 = vsel %vm331, %v310, 0
      %v414 = vsel %vm331, %v311, 0
      %v417 = vsel %vm331, %v312, 0
      %v420 = vsel %vm331, %v313, 0
      %v423 = vsel %vm331, %v314, 0
      %v426 = vsel %vm331, %v315, 0
      %428 = vmatprep.subr.mxu0 0.0
      %429 = vmatpush1.msra.mxu0 %v316
      %430 = vmatprep.subr.mxu0 0.0
      %431 = vmatpush1.msra.mxu0 %v317
      %432 = vmatprep.subr.mxu0 0.0
      %433 = vmatpush1.msra.mxu0 %v318
      %434 = vmatprep.subr.mxu0 0.0
      %435 = vmatpush1.msra.mxu0 %v319
      %436 = vmatprep.subr.mxu0 0.0
      %437 = vmatpush1.msra.mxu0 %v320
      %438 = vmatprep.subr.mxu0 0.0
      %439 = vmatpush1.msra.mxu0 %v321
      %440 = vmatprep.subr.mxu0 0.0
      %441 = vmatpush1.msra.mxu0 %v322
      %442 = vmatprep.subr.mxu0 0.0
      %443 = vmatpush1.msra.mxu0 %v323
      %444 = vmatprep.subr.mxu0 0.0
      %445 = vmatpush1.msra.mxu0 0.0
      %446 = vmatprep.subr.mxu0 0.0
      %447 = vmatpush1.msra.mxu0 0.0
      %448 = vmatprep.subr.mxu0 0.0
      %449 = vmatpush1.msra.mxu0 0.0
      %450 = vmatprep.subr.mxu0 0.0
      %451 = vmatpush1.msra.mxu0 0.0
      %452 = vmatprep.subr.mxu0 0.0
      %453 = vmatpush1.msra.mxu0 0.0
      %454 = vmatprep.subr.mxu0 0.0
      %455 = vmatpush1.msra.mxu0 0.0
      %456 = vmatprep.subr.mxu0 0.0
      %457 = vmatpush1.msra.mxu0 0.0
      %458 = vmatprep.subr.mxu0 0.0
      %459 = vmatpush1.msra.mxu0 0.0
      %460 = vmatprep.subr.mxu0 0.0
      %461 = vmatpush1.msra.mxu0 0.0
      %462 = vmatprep.subr.mxu0 0.0
      %463 = vmatpush1.msra.mxu0 0.0
      %464 = vmatprep.subr.mxu0 0.0
      %465 = vmatpush1.msra.mxu0 0.0
      %466 = vmatprep.subr.mxu0 0.0
      %467 = vmatpush1.msra.mxu0 0.0
      %468 = vmatprep.subr.mxu0 0.0
      %469 = vmatpush1.msra.mxu0 0.0
      %470 = vmatprep.subr.mxu0 0.0
      %471 = vmatpush1.msra.mxu0 0.0
      %472 = vmatprep.subr.mxu0 0.0
      %473 = vmatpush1.msra.mxu0 0.0
      %474 = vmatprep.subr.mxu0 0.0
      %475 = vmatpush1.msra.mxu0 0.0
      %476 = vmatprep.subr.mxu0 0.0
      %477 = vmatpush1.msra.mxu0 0.0
      %478 = vmatprep.subr.mxu0 0.0
      %479 = vmatpush1.msra.mxu0 0.0
      %480 = vmatprep.subr.mxu0 0.0
      %481 = vmatpush1.msra.mxu0 0.0
      %482 = vmatprep.subr.mxu0 0.0
      %483 = vmatpush1.msra.mxu0 0.0
      %484 = vmatprep.subr.mxu0 0.0
      %485 = vmatpush1.msra.mxu0 0.0
      %486 = vmatprep.subr.mxu0 0.0
      %487 = vmatpush1.msra.mxu0 0.0
      %488 = vmatprep.subr.mxu0 0.0
      %489 = vmatpush1.msra.mxu0 0.0
      %490 = vmatprep.subr.mxu0 0.0
      %491 = vmatpush1.msra.mxu0 0.0
      %492 = vmatprep.mubr.f32.mxu0 0.0
      %493 = vmatmul.mubr.f32.gmra.mrb[0].mxu0 %v333
      %v494 = vpop.f32.mrb[0].mxu0
      %v495 = vadd.f32 %v329, %v494
      %v496 = vpop.f32.mrb[0].mxu0
      %497 = vmatprep.mubr.f32.mxu0 0.0
      %498 = vmatmul.mubr.f32.gmra.mrb[0].mxu0 %v336
      %v499 = vpop.f32.mrb[0].mxu0
      %v500 = vadd.f32 %v329, %v499
      %v501 = vpop.f32.mrb[0].mxu0
      %502 = vmatprep.mubr.f32.mxu0 0.0
      %503 = vmatmul.mubr.f32.gmra.mrb[0].mxu0 %v339
      %v504 = vpop.f32.mrb[0].mxu0
      %v505 = vadd.f32 %v329, %v504
      %v506 = vpop.f32.mrb[0].mxu0
      %507 = vmatprep.mubr.f32.mxu0 0.0
      %508 = vmatmul.mubr.f32.gmra.mrb[0].mxu0 %v342
      %v509 = vpop.f32.mrb[0].mxu0
      %v510 = vadd.f32 %v329, %v509
      %v511 = vpop.f32.mrb[0].mxu0
      %512 = vmatprep.mubr.f32.mxu0 0.0
      %513 = vmatmul.mubr.f32.gmra.mrb[0].mxu0 %v345
      %v514 = vpop.f32.mrb[0].mxu0
      %v515 = vadd.f32 %v329, %v514
      %v516 = vpop.f32.mrb[0].mxu0
      %517 = vmatprep.mubr.f32.mxu0 0.0
      %518 = vmatmul.mubr.f32.gmra.mrb[0].mxu0 %v348
      %v519 = vpop.f32.mrb[0].mxu0
      %v520 = vadd.f32 %v329, %v519
      %v521 = vpop.f32.mrb[0].mxu0
      %522 = vmatprep.mubr.f32.mxu0 0.0
      %523 = vmatmul.mubr.f32.gmra.mrb[0].mxu0 %v351
      %v524 = vpop.f32.mrb[0].mxu0
      %v525 = vadd.f32 %v329, %v524
      %v526 = vpop.f32.mrb[0].mxu0
      %527 = vmatprep.mubr.f32.mxu0 0.0
      %528 = vmatmul.mubr.f32.gmra.mrb[0].mxu0 %v354
      %v529 = vpop.f32.mrb[0].mxu0
      %v530 = vadd.f32 %v329, %v529
      %v531 = vpop.f32.mrb[0].mxu0
      %532 = vmatprep.mubr.f32.mxu0 0.0
      %533 = vmatmul.mubr.f32.gmra.mrb[0].mxu0 %v357
      %v534 = vpop.f32.mrb[0].mxu0
      %v535 = vadd.f32 %v329, %v534
      %v536 = vpop.f32.mrb[0].mxu0
      %537 = vmatprep.mubr.f32.mxu0 0.0
      %538 = vmatmul.mubr.f32.gmra.mrb[0].mxu0 %v360
      %v539 = vpop.f32.mrb[0].mxu0
      %v540 = vadd.f32 %v329, %v539
      %v541 = vpop.f32.mrb[0].mxu0
      %542 = vmatprep.mubr.f32.mxu0 0.0
      %543 = vmatmul.mubr.f32.gmra.mrb[0].mxu0 %v363
      %v544 = vpop.f32.mrb[0].mxu0
      %v545 = vadd.f32 %v329, %v544
      %v546 = vpop.f32.mrb[0].mxu0
      %547 = vmatprep.mubr.f32.mxu0 0.0
      %548 = vmatmul.mubr.f32.gmra.mrb[0].mxu0 %v366
      %v549 = vpop.f32.mrb[0].mxu0
      %v550 = vadd.f32 %v329, %v549
      %v551 = vpop.f32.mrb[0].mxu0
      %552 = vmatprep.mubr.f32.mxu0 0.0
      %553 = vmatmul.mubr.f32.gmra.mrb[0].mxu0 %v369
      %v554 = vpop.f32.mrb[0].mxu0
      %v555 = vadd.f32 %v329, %v554
      %v556 = vpop.f32.mrb[0].mxu0
      %557 = vmatprep.mubr.f32.mxu0 0.0
      %558 = vmatmul.mubr.f32.gmra.mrb[0].mxu0 %v372
      %v559 = vpop.f32.mrb[0].mxu0
      %v560 = vadd.f32 %v329, %v559
      %v561 = vpop.f32.mrb[0].mxu0
      %562 = vmatprep.mubr.f32.mxu0 0.0
      %563 = vmatmul.mubr.f32.gmra.mrb[0].mxu0 %v375
      %v564 = vpop.f32.mrb[0].mxu0
      %v565 = vadd.f32 %v329, %v564
      %v566 = vpop.f32.mrb[0].mxu0
      %567 = vmatprep.mubr.f32.mxu0 0.0
      %568 = vmatmul.mubr.f32.gmra.mrb[0].mxu0 %v378
      %v569 = vpop.f32.mrb[0].mxu0
      %v570 = vadd.f32 %v329, %v569
      %v571 = vpop.f32.mrb[0].mxu0
      %572 = vmatprep.mubr.f32.mxu0 0.0
      %573 = vmatmul.mubr.f32.gmra.mrb[0].mxu0 %v381
      %v574 = vpop.f32.mrb[0].mxu0
      %v575 = vadd.f32 %v329, %v574
      %v576 = vpop.f32.mrb[0].mxu0
      %577 = vmatprep.mubr.f32.mxu0 0.0
      %578 = vmatmul.mubr.f32.gmra.mrb[0].mxu0 %v384
      %v579 = vpop.f32.mrb[0].mxu0
      %v580 = vadd.f32 %v329, %v579
      %v581 = vpop.f32.mrb[0].mxu0
      %582 = vmatprep.mubr.f32.mxu0 0.0
      %583 = vmatmul.mubr.f32.gmra.mrb[0].mxu0 %v387
      %v584 = vpop.f32.mrb[0].mxu0
      %v585 = vadd.f32 %v329, %v584
      %v586 = vpop.f32.mrb[0].mxu0
      %587 = vmatprep.mubr.f32.mxu0 0.0
      %588 = vmatmul.mubr.f32.gmra.mrb[0].mxu0 %v390
      %v589 = vpop.f32.mrb[0].mxu0
      %v590 = vadd.f32 %v329, %v589
      %v591 = vpop.f32.mrb[0].mxu0
      %592 = vmatprep.mubr.f32.mxu0 0.0
      %593 = vmatmul.mubr.f32.gmra.mrb[0].mxu0 %v393
      %v594 = vpop.f32.mrb[0].mxu0
      %v595 = vadd.f32 %v329, %v594
      %v596 = vpop.f32.mrb[0].mxu0
      %597 = vmatprep.mubr.f32.mxu0 0.0
      %598 = vmatmul.mubr.f32.gmra.mrb[0].mxu0 %v396
      %v599 = vpop.f32.mrb[0].mxu0
      %v600 = vadd.f32 %v329, %v599
      %v601 = vpop.f32.mrb[0].mxu0
      %602 = vmatprep.mubr.f32.mxu0 0.0
      %603 = vmatmul.mubr.f32.gmra.mrb[0].mxu0 %v399
      %v604 = vpop.f32.mrb[0].mxu0
      %v605 = vadd.f32 %v329, %v604
      %v606 = vpop.f32.mrb[0].mxu0
      %607 = vmatprep.mubr.f32.mxu0 0.0
      %608 = vmatmul.mubr.f32.gmra.mrb[0].mxu0 %v402
      %v609 = vpop.f32.mrb[0].mxu0
      %v610 = vadd.f32 %v329, %v609
      %v611 = vpop.f32.mrb[0].mxu0
      %612 = vmatprep.mubr.f32.mxu0 0.0
      %613 = vmatmul.mubr.f32.gmra.mrb[0].mxu0 %v405
      %v614 = vpop.f32.mrb[0].mxu0
      %v615 = vadd.f32 %v329, %v614
      %v616 = vpop.f32.mrb[0].mxu0
      %617 = vmatprep.mubr.f32.mxu0 0.0
      %618 = vmatmul.mubr.f32.gmra.mrb[0].mxu0 %v408
      %v619 = vpop.f32.mrb[0].mxu0
      %v620 = vadd.f32 %v329, %v619
      %v621 = vpop.f32.mrb[0].mxu0
      %622 = vmatprep.mubr.f32.mxu0 0.0
      %623 = vmatmul.mubr.f32.gmra.mrb[0].mxu0 %v411
      %v624 = vpop.f32.mrb[0].mxu0
      %v625 = vadd.f32 %v329, %v624
      %v626 = vpop.f32.mrb[0].mxu0
      %627 = vmatprep.mubr.f32.mxu0 0.0
      %628 = vmatmul.mubr.f32.gmra.mrb[0].mxu0 %v414
      %v629 = vpop.f32.mrb[0].mxu0
      %v630 = vadd.f32 %v329, %v629
      %v631 = vpop.f32.mrb[0].mxu0
      %632 = vmatprep.mubr.f32.mxu0 0.0
      %633 = vmatmul.mubr.f32.gmra.mrb[0].mxu0 %v417
      %v634 = vpop.f32.mrb[0].mxu0
      %v635 = vadd.f32 %v329, %v634
      %v636 = vpop.f32.mrb[0].mxu0
      %637 = vmatprep.mubr.f32.mxu0 0.0
      %638 = vmatmul.mubr.f32.gmra.mrb[0].mxu0 %v420
      %v639 = vpop.f32.mrb[0].mxu0
      %v640 = vadd.f32 %v329, %v639
      %v641 = vpop.f32.mrb[0].mxu0
      %642 = vmatprep.mubr.f32.mxu0 0.0
      %643 = vmatmul.mubr.f32.gmra.mrb[0].mxu0 %v423
      %v644 = vpop.f32.mrb[0].mxu0
      %v645 = vadd.f32 %v329, %v644
      %v646 = vpop.f32.mrb[0].mxu0
      %647 = vmatprep.mubr.f32.mxu0 0.0
      %648 = vmatmul.mubr.f32.gmra.mrb[0].mxu0 %v426
      %v649 = vpop.f32.mrb[0].mxu0
      %v650 = vadd.f32 %v329, %v649
      %v651 = vpop.f32.mrb[0].mxu0
      %652 = vdwg.mxu0
      %v653 = vmax.f32 %v495, 0.0
      %v654 = vmax.f32 %v500, 0.0
      %v655 = vmax.f32 %v505, 0.0
      %v656 = vmax.f32 %v510, 0.0
      %v657 = vmax.f32 %v515, 0.0
      %v658 = vmax.f32 %v520, 0.0
      %v659 = vmax.f32 %v525, 0.0
      %v660 = vmax.f32 %v530, 0.0
      %v661 = vmax.f32 %v535, 0.0
      %v662 = vmax.f32 %v540, 0.0
      %v663 = vmax.f32 %v545, 0.0
      %v664 = vmax.f32 %v550, 0.0
      %v665 = vmax.f32 %v555, 0.0
      %v666 = vmax.f32 %v560, 0.0
      %v667 = vmax.f32 %v565, 0.0
      %v668 = vmax.f32 %v570, 0.0
      %v669 = vmax.f32 %v575, 0.0
      %v670 = vmax.f32 %v580, 0.0
      %v671 = vmax.f32 %v585, 0.0
      %v672 = vmax.f32 %v590, 0.0
      %v673 = vmax.f32 %v595, 0.0
      %v674 = vmax.f32 %v600, 0.0
      %v675 = vmax.f32 %v605, 0.0
      %v676 = vmax.f32 %v610, 0.0
      %v677 = vmax.f32 %v615, 0.0
      %v678 = vmax.f32 %v620, 0.0
      %v679 = vmax.f32 %v625, 0.0
      %v680 = vmax.f32 %v630, 0.0
      %v681 = vmax.f32 %v635, 0.0
      %v682 = vmax.f32 %v640, 0.0
      %v683 = vmax.f32 %v645, 0.0
      %v684 = vmax.f32 %v650, 0.0
      %v685 = vld [vmem:[%s3] sm:$0xff]
      %v686 = vld [vmem:[%s3 + $0x8] sm:$0xff]
      %v687 = vld [vmem:[%s3 + $0x10] sm:$0xff]
      %v688 = vld [vmem:[%s3 + $0x18] sm:$0xff]
      %v689 = vld [vmem:[%s3 + $0x20] sm:$0xff]
      %v690 = vld [vmem:[%s3 + $0x28] sm:$0xff]
      %v691 = vld [vmem:[%s3 + $0x30] sm:$0xff]
      %v692 = vld [vmem:[%s3 + $0x38] sm:$0xff]
      %v693 = vld [vmem:[%s3 + $0x40] sm:$0xff]
      %v694 = vld [vmem:[%s3 + $0x48] sm:$0xff]
      %v695 = vld [vmem:[%s3 + $0x50] sm:$0xff]
      %v696 = vld [vmem:[%s3 + $0x58] sm:$0xff]
      %v697 = vld [vmem:[%s3 + $0x60] sm:$0xff]
      %v698 = vld [vmem:[%s3 + $0x68] sm:$0xff]
      %v699 = vld [vmem:[%s3 + $0x70] sm:$0xff]
      %v700 = vld [vmem:[%s3 + $0x78] sm:$0xff]
      %v701 = vld [vmem:[%s4] sm:$0x1]
      %v703 = vlaneseq
      %v704 = vshrl.u32 %v703, 7
      %v705 = vsub.s32 0, %v704
      %v706 = vrot.slane %v701, %v705
      %708 = vmatprep.subr.mxu0 0.0
      %709 = vmatpush1.msra.mxu0 %v685
      %710 = vmatprep.subr.mxu0 0.0
      %711 = vmatpush1.msra.mxu0 %v686
      %712 = vmatprep.subr.mxu0 0.0
      %713 = vmatpush1.msra.mxu0 %v687
      %714 = vmatprep.subr.mxu0 0.0
      %715 = vmatpush1.msra.mxu0 %v688
      %716 = vmatprep.subr.mxu0 0.0
      %717 = vmatpush1.msra.mxu0 %v689
      %718 = vmatprep.subr.mxu0 0.0
      %719 = vmatpush1.msra.mxu0 %v690
      %720 = vmatprep.subr.mxu0 0.0
      %721 = vmatpush1.msra.mxu0 %v691
      %722 = vmatprep.subr.mxu0 0.0
      %723 = vmatpush1.msra.mxu0 %v692
      %724 = vmatprep.subr.mxu0 0.0
      %725 = vmatpush1.msra.mxu0 %v693
      %726 = vmatprep.subr.mxu0 0.0
      %727 = vmatpush1.msra.mxu0 %v694
      %728 = vmatprep.subr.mxu0 0.0
      %729 = vmatpush1.msra.mxu0 %v695
      %730 = vmatprep.subr.mxu0 0.0
      %731 = vmatpush1.msra.mxu0 %v696
      %732 = vmatprep.subr.mxu0 0.0
      %733 = vmatpush1.msra.mxu0 %v697
      %734 = vmatprep.subr.mxu0 0.0
      %735 = vmatpush1.msra.mxu0 %v698
      %736 = vmatprep.subr.mxu0 0.0
      %737 = vmatpush1.msra.mxu0 %v699
      %738 = vmatprep.subr.mxu0 0.0
      %739 = vmatpush1.msra.mxu0 %v700
      %740 = vmatprep.subr.mxu0 0.0
      %741 = vmatpush1.msra.mxu0 0.0
      %742 = vmatprep.subr.mxu0 0.0
      %743 = vmatpush1.msra.mxu0 0.0
      %744 = vmatprep.subr.mxu0 0.0
      %745 = vmatpush1.msra.mxu0 0.0
      %746 = vmatprep.subr.mxu0 0.0
      %747 = vmatpush1.msra.mxu0 0.0
      %748 = vmatprep.subr.mxu0 0.0
      %749 = vmatpush1.msra.mxu0 0.0
      %750 = vmatprep.subr.mxu0 0.0
      %751 = vmatpush1.msra.mxu0 0.0
      %752 = vmatprep.subr.mxu0 0.0
      %753 = vmatpush1.msra.mxu0 0.0
      %754 = vmatprep.subr.mxu0 0.0
      %755 = vmatpush1.msra.mxu0 0.0
      %756 = vmatprep.subr.mxu0 0.0
      %757 = vmatpush1.msra.mxu0 0.0
      %758 = vmatprep.subr.mxu0 0.0
      %759 = vmatpush1.msra.mxu0 0.0
      %760 = vmatprep.subr.mxu0 0.0
      %761 = vmatpush1.msra.mxu0 0.0
      %762 = vmatprep.subr.mxu0 0.0
      %763 = vmatpush1.msra.mxu0 0.0
      %764 = vmatprep.subr.mxu0 0.0
      %765 = vmatpush1.msra.mxu0 0.0
      %766 = vmatprep.subr.mxu0 0.0
      %767 = vmatpush1.msra.mxu0 0.0
      %768 = vmatprep.subr.mxu0 0.0
      %769 = vmatpush1.msra.mxu0 0.0
      %770 = vmatprep.subr.mxu0 0.0
      %771 = vmatpush1.msra.mxu0 0.0
      %772 = vmatprep.mubr.f32.mxu0 0.0
      %773 = vmatmul.mubr.f32.gmra.mrb[0].mxu0 %v653
      %v774 = vpop.f32.mrb[0].mxu0
      %v775 = vadd.f32 %v706, %v774
      %v776 = vpop.f32.mrb[0].mxu0
      %777 = vmatprep.mubr.f32.mxu0 0.0
      %778 = vmatmul.mubr.f32.gmra.mrb[0].mxu0 %v654
      %v779 = vpop.f32.mrb[0].mxu0
      %v780 = vadd.f32 %v706, %v779
      %v781 = vpop.f32.mrb[0].mxu0
      %782 = vmatprep.mubr.f32.mxu0 0.0
      %783 = vmatmul.mubr.f32.gmra.mrb[0].mxu0 %v655
      %v784 = vpop.f32.mrb[0].mxu0
      %v785 = vadd.f32 %v706, %v784
      %v786 = vpop.f32.mrb[0].mxu0
      %787 = vmatprep.mubr.f32.mxu0 0.0
      %788 = vmatmul.mubr.f32.gmra.mrb[0].mxu0 %v656
      %v789 = vpop.f32.mrb[0].mxu0
      %v790 = vadd.f32 %v706, %v789
      %v791 = vpop.f32.mrb[0].mxu0
      %792 = vmatprep.mubr.f32.mxu0 0.0
      %793 = vmatmul.mubr.f32.gmra.mrb[0].mxu0 %v657
      %v794 = vpop.f32.mrb[0].mxu0
      %v795 = vadd.f32 %v706, %v794
      %v796 = vpop.f32.mrb[0].mxu0
      %797 = vmatprep.mubr.f32.mxu0 0.0
      %798 = vmatmul.mubr.f32.gmra.mrb[0].mxu0 %v658
      %v799 = vpop.f32.mrb[0].mxu0
      %v800 = vadd.f32 %v706, %v799
      %v801 = vpop.f32.mrb[0].mxu0
      %802 = vmatprep.mubr.f32.mxu0 0.0
      %803 = vmatmul.mubr.f32.gmra.mrb[0].mxu0 %v659
      %v804 = vpop.f32.mrb[0].mxu0
      %v805 = vadd.f32 %v706, %v804
      %v806 = vpop.f32.mrb[0].mxu0
      %807 = vmatprep.mubr.f32.mxu0 0.0
      %808 = vmatmul.mubr.f32.gmra.mrb[0].mxu0 %v660
      %v809 = vpop.f32.mrb[0].mxu0
      %v810 = vadd.f32 %v706, %v809
      %v811 = vpop.f32.mrb[0].mxu0
      %812 = vmatprep.mubr.f32.mxu0 0.0
      %813 = vmatmul.mubr.f32.gmra.mrb[0].mxu0 %v661
      %v814 = vpop.f32.mrb[0].mxu0
      %v815 = vadd.f32 %v706, %v814
      %v816 = vpop.f32.mrb[0].mxu0
      %817 = vmatprep.mubr.f32.mxu0 0.0
      %818 = vmatmul.mubr.f32.gmra.mrb[0].mxu0 %v662
      %v819 = vpop.f32.mrb[0].mxu0
      %v820 = vadd.f32 %v706, %v819
      %v821 = vpop.f32.mrb[0].mxu0
      %822 = vmatprep.mubr.f32.mxu0 0.0
      %823 = vmatmul.mubr.f32.gmra.mrb[0].mxu0 %v663
      %v824 = vpop.f32.mrb[0].mxu0
      %v825 = vadd.f32 %v706, %v824
      %v826 = vpop.f32.mrb[0].mxu0
      %827 = vmatprep.mubr.f32.mxu0 0.0
      %828 = vmatmul.mubr.f32.gmra.mrb[0].mxu0 %v664
      %v829 = vpop.f32.mrb[0].mxu0
      %v830 = vadd.f32 %v706, %v829
      %v831 = vpop.f32.mrb[0].mxu0
      %832 = vmatprep.mubr.f32.mxu0 0.0
      %833 = vmatmul.mubr.f32.gmra.mrb[0].mxu0 %v665
      %v834 = vpop.f32.mrb[0].mxu0
      %v835 = vadd.f32 %v706, %v834
      %v836 = vpop.f32.mrb[0].mxu0
      %837 = vmatprep.mubr.f32.mxu0 0.0
      %838 = vmatmul.mubr.f32.gmra.mrb[0].mxu0 %v666
      %v839 = vpop.f32.mrb[0].mxu0
      %v840 = vadd.f32 %v706, %v839
      %v841 = vpop.f32.mrb[0].mxu0
      %842 = vmatprep.mubr.f32.mxu0 0.0
      %843 = vmatmul.mubr.f32.gmra.mrb[0].mxu0 %v667
      %v844 = vpop.f32.mrb[0].mxu0
      %v845 = vadd.f32 %v706, %v844
      %v846 = vpop.f32.mrb[0].mxu0
      %847 = vmatprep.mubr.f32.mxu0 0.0
      %848 = vmatmul.mubr.f32.gmra.mrb[0].mxu0 %v668
      %v849 = vpop.f32.mrb[0].mxu0
      %v850 = vadd.f32 %v706, %v849
      %v851 = vpop.f32.mrb[0].mxu0
      %852 = vmatprep.mubr.f32.mxu0 0.0
      %853 = vmatmul.mubr.f32.gmra.mrb[0].mxu0 %v669
      %v854 = vpop.f32.mrb[0].mxu0
      %v855 = vadd.f32 %v706, %v854
      %v856 = vpop.f32.mrb[0].mxu0
      %857 = vmatprep.mubr.f32.mxu0 0.0
      %858 = vmatmul.mubr.f32.gmra.mrb[0].mxu0 %v670
      %v859 = vpop.f32.mrb[0].mxu0
      %v860 = vadd.f32 %v706, %v859
      %v861 = vpop.f32.mrb[0].mxu0
      %862 = vmatprep.mubr.f32.mxu0 0.0
      %863 = vmatmul.mubr.f32.gmra.mrb[0].mxu0 %v671
      %v864 = vpop.f32.mrb[0].mxu0
      %v865 = vadd.f32 %v706, %v864
      %v866 = vpop.f32.mrb[0].mxu0
      %867 = vmatprep.mubr.f32.mxu0 0.0
      %868 = vmatmul.mubr.f32.gmra.mrb[0].mxu0 %v672
      %v869 = vpop.f32.mrb[0].mxu0
      %v870 = vadd.f32 %v706, %v869
      %v871 = vpop.f32.mrb[0].mxu0
      %872 = vmatprep.mubr.f32.mxu0 0.0
      %873 = vmatmul.mubr.f32.gmra.mrb[0].mxu0 %v673
      %v874 = vpop.f32.mrb[0].mxu0
      %v875 = vadd.f32 %v706, %v874
      %v876 = vpop.f32.mrb[0].mxu0
      %877 = vmatprep.mubr.f32.mxu0 0.0
      %878 = vmatmul.mubr.f32.gmra.mrb[0].mxu0 %v674
      %v879 = vpop.f32.mrb[0].mxu0
      %v880 = vadd.f32 %v706, %v879
      %v881 = vpop.f32.mrb[0].mxu0
      %882 = vmatprep.mubr.f32.mxu0 0.0
      %883 = vmatmul.mubr.f32.gmra.mrb[0].mxu0 %v675
      %v884 = vpop.f32.mrb[0].mxu0
      %v885 = vadd.f32 %v706, %v884
      %v886 = vpop.f32.mrb[0].mxu0
      %887 = vmatprep.mubr.f32.mxu0 0.0
      %888 = vmatmul.mubr.f32.gmra.mrb[0].mxu0 %v676
      %v889 = vpop.f32.mrb[0].mxu0
      %v890 = vadd.f32 %v706, %v889
      %v891 = vpop.f32.mrb[0].mxu0
      %892 = vmatprep.mubr.f32.mxu0 0.0
      %893 = vmatmul.mubr.f32.gmra.mrb[0].mxu0 %v677
      %v894 = vpop.f32.mrb[0].mxu0
      %v895 = vadd.f32 %v706, %v894
      %v896 = vpop.f32.mrb[0].mxu0
      %897 = vmatprep.mubr.f32.mxu0 0.0
      %898 = vmatmul.mubr.f32.gmra.mrb[0].mxu0 %v678
      %v899 = vpop.f32.mrb[0].mxu0
      %v900 = vadd.f32 %v706, %v899
      %v901 = vpop.f32.mrb[0].mxu0
      %902 = vmatprep.mubr.f32.mxu0 0.0
      %903 = vmatmul.mubr.f32.gmra.mrb[0].mxu0 %v679
      %v904 = vpop.f32.mrb[0].mxu0
      %v905 = vadd.f32 %v706, %v904
      %v906 = vpop.f32.mrb[0].mxu0
      %907 = vmatprep.mubr.f32.mxu0 0.0
      %908 = vmatmul.mubr.f32.gmra.mrb[0].mxu0 %v680
      %v909 = vpop.f32.mrb[0].mxu0
      %v910 = vadd.f32 %v706, %v909
      %v911 = vpop.f32.mrb[0].mxu0
      %912 = vmatprep.mubr.f32.mxu0 0.0
      %913 = vmatmul.mubr.f32.gmra.mrb[0].mxu0 %v681
      %v914 = vpop.f32.mrb[0].mxu0
      %v915 = vadd.f32 %v706, %v914
      %v916 = vpop.f32.mrb[0].mxu0
      %917 = vmatprep.mubr.f32.mxu0 0.0
      %918 = vmatmul.mubr.f32.gmra.mrb[0].mxu0 %v682
      %v919 = vpop.f32.mrb[0].mxu0
      %v920 = vadd.f32 %v706, %v919
      %v921 = vpop.f32.mrb[0].mxu0
      %922 = vmatprep.mubr.f32.mxu0 0.0
      %923 = vmatmul.mubr.f32.gmra.mrb[0].mxu0 %v683
      %v924 = vpop.f32.mrb[0].mxu0
      %v925 = vadd.f32 %v706, %v924
      %v926 = vpop.f32.mrb[0].mxu0
      %927 = vmatprep.mubr.f32.mxu0 0.0
      %928 = vmatmul.mubr.f32.gmra.mrb[0].mxu0 %v684
      %v929 = vpop.f32.mrb[0].mxu0
      %v930 = vadd.f32 %v706, %v929
      %v931 = vpop.f32.mrb[0].mxu0
      %932 = vdwg.mxu0
      %v933 = vmax.f32 %v775, 0.0
      %v934 = vmax.f32 %v780, 0.0
      %v935 = vmax.f32 %v785, 0.0
      %v936 = vmax.f32 %v790, 0.0
      %v937 = vmax.f32 %v795, 0.0
      %v938 = vmax.f32 %v800, 0.0
      %v939 = vmax.f32 %v805, 0.0
      %v940 = vmax.f32 %v810, 0.0
      %v941 = vmax.f32 %v815, 0.0
      %v942 = vmax.f32 %v820, 0.0
      %v943 = vmax.f32 %v825, 0.0
      %v944 = vmax.f32 %v830, 0.0
      %v945 = vmax.f32 %v835, 0.0
      %v946 = vmax.f32 %v840, 0.0
      %v947 = vmax.f32 %v845, 0.0
      %v948 = vmax.f32 %v850, 0.0
      %v949 = vmax.f32 %v855, 0.0
      %v950 = vmax.f32 %v860, 0.0
      %v951 = vmax.f32 %v865, 0.0
      %v952 = vmax.f32 %v870, 0.0
      %v953 = vmax.f32 %v875, 0.0
      %v954 = vmax.f32 %v880, 0.0
      %v955 = vmax.f32 %v885, 0.0
      %v956 = vmax.f32 %v890, 0.0
      %v957 = vmax.f32 %v895, 0.0
      %v958 = vmax.f32 %v900, 0.0
      %v959 = vmax.f32 %v905, 0.0
      %v960 = vmax.f32 %v910, 0.0
      %v961 = vmax.f32 %v915, 0.0
      %v962 = vmax.f32 %v920, 0.0
      %v963 = vmax.f32 %v925, 0.0
      %v964 = vmax.f32 %v930, 0.0
      %v965 = vld [vmem:[%s5] sm:$0x1]
      %v967 = vlaneseq
      %v968 = vshrl.u32 %v967, 7
      %v969 = vsub.s32 0, %v968
      %v970 = vrot.slane %v965, %v969
      %v972 = vmul.f32 %v933, %v970
      %v973 = vmul.f32 %v934, %v970
      %v974 = vmul.f32 %v935, %v970
      %v975 = vmul.f32 %v936, %v970
      %v976 = vmul.f32 %v937, %v970
      %v977 = vmul.f32 %v938, %v970
      %v978 = vmul.f32 %v939, %v970
      %v979 = vmul.f32 %v940, %v970
      %v980 = vmul.f32 %v941, %v970
      %v981 = vmul.f32 %v942, %v970
      %v982 = vmul.f32 %v943, %v970
      %v983 = vmul.f32 %v944, %v970
      %v984 = vmul.f32 %v945, %v970
      %v985 = vmul.f32 %v946, %v970
      %v986 = vmul.f32 %v947, %v970
      %v987 = vmul.f32 %v948, %v970
      %v988 = vmul.f32 %v949, %v970
      %v989 = vmul.f32 %v950, %v970
      %v990 = vmul.f32 %v951, %v970
      %v991 = vmul.f32 %v952, %v970
      %v992 = vmul.f32 %v953, %v970
      %v993 = vmul.f32 %v954, %v970
      %v994 = vmul.f32 %v955, %v970
      %v995 = vmul.f32 %v956, %v970
      %v996 = vmul.f32 %v957, %v970
      %v997 = vmul.f32 %v958, %v970
      %v998 = vmul.f32 %v959, %v970
      %v999 = vmul.f32 %v960, %v970
      %v1000 = vmul.f32 %v961, %v970
      %v1001 = vmul.f32 %v962, %v970
      %v1002 = vmul.f32 %v963, %v970
      %v1003 = vmul.f32 %v964, %v970
      %1004 = vadd.xlane.f32.xlu0 %v972
      %v1005 = vpop.xlane.xlu0 %1004
      %1006 = vadd.xlane.f32.xlu0 %v973
      %v1007 = vpop.xlane.xlu0 %1006
      %1008 = vadd.xlane.f32.xlu0 %v974
      %v1009 = vpop.xlane.xlu0 %1008
      %1010 = vadd.xlane.f32.xlu0 %v975
      %v1011 = vpop.xlane.xlu0 %1010
      %1012 = vadd.xlane.f32.xlu0 %v976
      %v1013 = vpop.xlane.xlu0 %1012
      %1014 = vadd.xlane.f32.xlu0 %v977
      %v1015 = vpop.xlane.xlu0 %1014
      %1016 = vadd.xlane.f32.xlu0 %v978
      %v1017 = vpop.xlane.xlu0 %1016
      %1018 = vadd.xlane.f32.xlu0 %v979
      %v1019 = vpop.xlane.xlu0 %1018
      %1020 = vadd.xlane.f32.xlu0 %v980
      %v1021 = vpop.xlane.xlu0 %1020
      %1022 = vadd.xlane.f32.xlu0 %v981
      %v1023 = vpop.xlane.xlu0 %1022
      %1024 = vadd.xlane.f32.xlu0 %v982
      %v1025 = vpop.xlane.xlu0 %1024
      %1026 = vadd.xlane.f32.xlu0 %v983
      %v1027 = vpop.xlane.xlu0 %1026
      %1028 = vadd.xlane.f32.xlu0 %v984
      %v1029 = vpop.xlane.xlu0 %1028
      %1030 = vadd.xlane.f32.xlu0 %v985
      %v1031 = vpop.xlane.xlu0 %1030
      %1032 = vadd.xlane.f32.xlu0 %v986
      %v1033 = vpop.xlane.xlu0 %1032
      %1034 = vadd.xlane.f32.xlu0 %v987
      %v1035 = vpop.xlane.xlu0 %1034
      %1036 = vadd.xlane.f32.xlu0 %v988
      %v1037 = vpop.xlane.xlu0 %1036
      %1038 = vadd.xlane.f32.xlu0 %v989
      %v1039 = vpop.xlane.xlu0 %1038
      %1040 = vadd.xlane.f32.xlu0 %v990
      %v1041 = vpop.xlane.xlu0 %1040
      %1042 = vadd.xlane.f32.xlu0 %v991
      %v1043 = vpop.xlane.xlu0 %1042
      %1044 = vadd.xlane.f32.xlu0 %v992
      %v1045 = vpop.xlane.xlu0 %1044
      %1046 = vadd.xlane.f32.xlu0 %v993
      %v1047 = vpop.xlane.xlu0 %1046
      %1048 = vadd.xlane.f32.xlu0 %v994
      %v1049 = vpop.xlane.xlu0 %1048
      %1050 = vadd.xlane.f32.xlu0 %v995
      %v1051 = vpop.xlane.xlu0 %1050
      %1052 = vadd.xlane.f32.xlu0 %v996
      %v1053 = vpop.xlane.xlu0 %1052
      %1054 = vadd.xlane.f32.xlu0 %v997
      %v1055 = vpop.xlane.xlu0 %1054
      %1056 = vadd.xlane.f32.xlu0 %v998
      %v1057 = vpop.xlane.xlu0 %1056
      %1058 = vadd.xlane.f32.xlu0 %v999
      %v1059 = vpop.xlane.xlu0 %1058
      %1060 = vadd.xlane.f32.xlu0 %v1000
      %v1061 = vpop.xlane.xlu0 %1060
      %1062 = vadd.xlane.f32.xlu0 %v1001
      %v1063 = vpop.xlane.xlu0 %1062
      %1064 = vadd.xlane.f32.xlu0 %v1002
      %v1065 = vpop.xlane.xlu0 %1064
      %1066 = vadd.xlane.f32.xlu0 %v1003
      %v1067 = vpop.xlane.xlu0 %1066
      %v1068 = vld [vmem:[#allocation2] sm:$0x1]
      %v1070 = vlaneseq
      %v1071 = vshrl.u32 %v1070, 7
      %v1072 = vsub.s32 0, %v1071
      %v1073 = vrot.slane %v1068, %v1072
      %v1075 = vadd.f32 %v1005, %v1073
      %v1076 = vadd.f32 %v1007, %v1073
      %v1077 = vadd.f32 %v1009, %v1073
      %v1078 = vadd.f32 %v1011, %v1073
      %v1079 = vadd.f32 %v1013, %v1073
      %v1080 = vadd.f32 %v1015, %v1073
      %v1081 = vadd.f32 %v1017, %v1073
      %v1082 = vadd.f32 %v1019, %v1073
      %v1083 = vadd.f32 %v1021, %v1073
      %v1084 = vadd.f32 %v1023, %v1073
      %v1085 = vadd.f32 %v1025, %v1073
      %v1086 = vadd.f32 %v1027, %v1073
      %v1087 = vadd.f32 %v1029, %v1073
      %v1088 = vadd.f32 %v1031, %v1073
      %v1089 = vadd.f32 %v1033, %v1073
      %v1090 = vadd.f32 %v1035, %v1073
      %v1091 = vadd.f32 %v1037, %v1073
      %v1092 = vadd.f32 %v1039, %v1073
      %v1093 = vadd.f32 %v1041, %v1073
      %v1094 = vadd.f32 %v1043, %v1073
      %v1095 = vadd.f32 %v1045, %v1073
      %v1096 = vadd.f32 %v1047, %v1073
      %v1097 = vadd.f32 %v1049, %v1073
      %v1098 = vadd.f32 %v1051, %v1073
      %v1099 = vadd.f32 %v1053, %v1073
      %v1100 = vadd.f32 %v1055, %v1073
      %v1101 = vadd.f32 %v1057, %v1073
      %v1102 = vadd.f32 %v1059, %v1073
      %v1103 = vadd.f32 %v1061, %v1073
      %v1104 = vadd.f32 %v1063, %v1073
      %v1105 = vadd.f32 %v1065, %v1073
      %v1106 = vadd.f32 %v1067, %v1073
      %vm1107 = vcmask 7168
      %1108 = vst.msk [vmem:[%s282] sm:$0xff] %vm1107, %v1075
      %1109 = vst.msk [vmem:[%s282 + $0x8] sm:$0xff] %vm1107, %v1076
      %1110 = vst.msk [vmem:[%s282 + $0x10] sm:$0xff] %vm1107, %v1077
      %1111 = vst.msk [vmem:[%s282 + $0x18] sm:$0xff] %vm1107, %v1078
      %1112 = vst.msk [vmem:[%s282 + $0x20] sm:$0xff] %vm1107, %v1079
      %1113 = vst.msk [vmem:[%s282 + $0x28] sm:$0xff] %vm1107, %v1080
      %1114 = vst.msk [vmem:[%s282 + $0x30] sm:$0xff] %vm1107, %v1081
      %1115 = vst.msk [vmem:[%s282 + $0x38] sm:$0xff] %vm1107, %v1082
      %1116 = vst.msk [vmem:[%s282 + $0x40] sm:$0xff] %vm1107, %v1083
      %1117 = vst.msk [vmem:[%s282 + $0x48] sm:$0xff] %vm1107, %v1084
      %1118 = vst.msk [vmem:[%s282 + $0x50] sm:$0xff] %vm1107, %v1085
      %1119 = vst.msk [vmem:[%s282 + $0x58] sm:$0xff] %vm1107, %v1086
      %1120 = vst.msk [vmem:[%s282 + $0x60] sm:$0xff] %vm1107, %v1087
      %1121 = vst.msk [vmem:[%s282 + $0x68] sm:$0xff] %vm1107, %v1088
      %1122 = vst.msk [vmem:[%s282 + $0x70] sm:$0xff] %vm1107, %v1089
      %1123 = vst.msk [vmem:[%s282 + $0x78] sm:$0xff] %vm1107, %v1090
      %1124 = vst.msk [vmem:[%s282 + $0x80] sm:$0xff] %vm1107, %v1091
      %1125 = vst.msk [vmem:[%s282 + $0x88] sm:$0xff] %vm1107, %v1092
      %1126 = vst.msk [vmem:[%s282 + $0x90] sm:$0xff] %vm1107, %v1093
      %1127 = vst.msk [vmem:[%s282 + $0x98] sm:$0xff] %vm1107, %v1094
      %1128 = vst.msk [vmem:[%s282 + $0xa0] sm:$0xff] %vm1107, %v1095
      %1129 = vst.msk [vmem:[%s282 + $0xa8] sm:$0xff] %vm1107, %v1096
      %1130 = vst.msk [vmem:[%s282 + $0xb0] sm:$0xff] %vm1107, %v1097
      %1131 = vst.msk [vmem:[%s282 + $0xb8] sm:$0xff] %vm1107, %v1098
      %1132 = vst.msk [vmem:[%s282 + $0xc0] sm:$0xff] %vm1107, %v1099
      %1133 = vst.msk [vmem:[%s282 + $0xc8] sm:$0xff] %vm1107, %v1100
      %1134 = vst.msk [vmem:[%s282 + $0xd0] sm:$0xff] %vm1107, %v1101
      %1135 = vst.msk [vmem:[%s282 + $0xd8] sm:$0xff] %vm1107, %v1102
      %1136 = vst.msk [vmem:[%s282 + $0xe0] sm:$0xff] %vm1107, %v1103
      %1137 = vst.msk [vmem:[%s282 + $0xe8] sm:$0xff] %vm1107, %v1104
      %1138 = vst.msk [vmem:[%s282 + $0xf0] sm:$0xff] %vm1107, %v1105
      %1139 = vst.msk [vmem:[%s282 + $0xf8] sm:$0xff] %vm1107, %v1106
      %s1140 = smul.u32 32, %s20
      %p1141 = scmp.lt.s32.totalorder %s1140, 63
      %s1142 = scalar_select %p1141, %s1140, 63
      %s1143 = smul.addr %s1142, 8
      %s1144 = scalar_lea.vmem %s7, %s1143
      // Predicated region
      $region49: #{mine_forward.1} parent=47 // pred_check
        %p1145 = pneg %p190
      $region50: #{mine_forward.1} parent=47 // pred_check_branch
        %1147 = sbr.rel (%p1145) target = $region52
      $region51: #{mine_forward.1} parent=47 // pred_region
        %s1148 = smul.u32 32, %s20
      $region52: #{mine_forward.1} parent=47 // pred_fallthru
        _
    $region48: #{mine_forward.1} parent=5 // pred_fallthru
      _
    %p1149 = scmp.le.s32.totalorder 2, %s15
    // Predicated region
    $region53: #{mine_forward.1} parent=5 // pred_check
      %p1150 = pneg %p1149
    $region54: #{mine_forward.1} parent=5 // pred_check_branch
      %1152 = sbr.rel (%p1150) target = $region56
    $region55: #{mine_forward.1} parent=5 // pred_region
      %s1153 = ssub.s32 %s15, 2
      // Predicated region
      $region57: #{mine_forward.1} parent=55 // pred_check
        %p1154 = pneg %p196
      $region58: #{mine_forward.1} parent=55 // pred_check_branch
        %1156 = sbr.rel (%p1154) target = $region60
      $region59: #{mine_forward.1} parent=55 // pred_region
        %s1157 = smul.u32 32, %s21
        %p1158 = scmp.lt.s32.totalorder %s1157, 63
        %s1159 = scalar_select %p1158, %s1157, 63
        %s1160 = smul.addr %s1159, 8
        %s1161 = scalar_lea.vmem %s7, %s1160
      $region60: #{mine_forward.1} parent=55 // pred_fallthru
        _
    $region56: #{mine_forward.1} parent=5 // pred_fallthru
      _
  $region6: #{mine_forward.1} parent=0 // loop_footer
    %s19 = sadd.s32 1, %s15
  $region7: #{mine_forward.1} parent=0 // loop_footer_branch
    %14 = sbr.rel target = $region3
  $region8: #{mine_forward.1} parent=0 // loop_exit
    _

</llo_original>
